<compile_context>
chip_gen: v7x
topology: tpu7x:2x2x1
jax: 0.10.0
libtpu: 0.0.40
codegen_flags: <defaults>
</compile_context>

<pallas_src>
import numpy as np
import jax
import jax.numpy as jnp
from jax.experimental import pallas as pl
from jax.experimental.pallas import tpu as pltpu


def make_pfb_fir_dft(M, P, W, frames_per_block=16, dft_dtype=jnp.float32):
    assert frames_per_block % 8 == 0, "frames_per_block must be a multiple of 8 (sublane tile)"
    size = M * P * W            # expected_input_size (samples per frame)
    WM = M * W
    Maxsize = WM - M
    NK = P * Maxsize            # FIR output length in the kernel's "s" layout (224)
    NOUT = 2 * NK               # packed [re | im] width (448)
    KP = ((NK + 127) // 128) * 128     # padded contraction dim (256)
    NP = ((NOUT + 127) // 128) * 128   # padded, lane-dense output width (512)
    F = frames_per_block

    # ---------------- parameters (deterministic, built in-script) ----------------
    # win_coeffs: Hamming-windowed sinc prototype filter of length M*P (typical PFB).
    taps = M * P
    n = np.arange(taps)
    win_flat = (np.sinc((n - taps / 2 + 0.5) / P) * np.hamming(taps)).astype(np.float32)
    # PyTorch: win_coeffs.reshape((M, P)).T ... .view(P, 1, 1, M) => weight[p, m] = win_flat[m*P + p]
    fir_w = win_flat.reshape(M, P).T.copy()                       # (P, M)

    # FIR weights expanded to per-tap lane vectors: fw_lane[m, l] = fir_w[l % P, m].
    fw_lane = np.stack([np.tile(fir_w[:, m], Maxsize) for m in range(M)]).astype(np.float32)  # (M, NK)

    # DFT matrices (reconstructed DFTLayer): real = cos, imag = -sin.
    kk = np.arange(Maxsize)[:, None]
    cc = np.arange(Maxsize)[None, :]
    ang = 2.0 * np.pi * kk * cc / Maxsize
    cos_mat = np.cos(ang).astype(np.float32)                      # (Maxsize, Maxsize)
    sin_mat = np.sin(ang).astype(np.float32)

    # ---- combined (permutation ∘ DFT) weight --------------------------------------
    # Kernel FIR output ("s") layout: s[l] = y[l % P, l // P], where y is the (P, Maxsize)
    # depthwise-conv output. The PyTorch forward feeds z = y.view(Maxsize, P) to the DFT:
    #     re[k, p] = sum_c cos[k, c] * y.flat[c*P + p]    (y.flat row-major over (P, Maxsize))
    # The y.flat -> s permutation is folded into the weight so no in-kernel relayout is
    # needed.  Output column layout:  out[:, k*P + p] = re[k, p],  out[:, NK + k*P + p] = im[k, p].
    dw = np.zeros((NK, NOUT), np.float32)
    for p in range(P):
        c = np.arange(Maxsize)
        idx = c * P + p                                    # position in y.flat
        rows = (idx % Maxsize) * P + (idx // Maxsize)      # same element's position in s
        cols = np.arange(Maxsize) * P + p                  # output column for each k
        dw[np.ix_(rows, cols)] = cos_mat.T                 # [c, k] -> cos[k, c]
        dw[np.ix_(rows, cols + NK)] = -sin_mat.T
    dw_pad = np.zeros((KP, NP), np.float32)                # pad to (8,128)-friendly tiles
    dw_pad[:NK, :NOUT] = dw

    fw_lane_j = jnp.asarray(fw_lane)                       # (M, NK)   f32
    dw_j = jnp.asarray(dw_pad).astype(dft_dtype)           # (KP, NP)  f32 or bf16
    fir_w_j = jnp.asarray(fir_w)
    cos_j = jnp.asarray(cos_mat)
    msin_j = jnp.asarray(-sin_mat)

    # ---------------- fused Pallas kernel ----------------
    def pfb_kernel(x_ref, fw_ref, dw_ref, out_ref):
        # x_ref : (F, size) f32  raw frames (frame = sublane, sample = lane)
        # fw_ref: (M, NK)   f32  lane-expanded FIR taps
        # dw_ref: (KP, NP)       permutation-folded [cos | -sin] DFT weights
        # out_ref: (F, NP)  f32  cols [0:NK) = re, [NK:2NK) = im (both in k*P+p order)
        x = x_ref[...]
        fw = fw_ref[...]
        # FIR: depthwise cross-correlation as M lane-shifted MACs (VPU, f32 on all gens).
        acc = x[:, 0:NK] * fw[0:1, :]
        for m in range(1, M):
            acc = acc + x[:, m * P:m * P + NK] * fw[m:m + 1, :]
        # Pad contraction axis to KP (zero lanes hit zero weight rows).
        if KP > NK:
            acc = jnp.concatenate(
                [acc, jnp.zeros((F, KP - NK), jnp.float32)], axis=1)
        # Permutation-folded DFT: one lane-dense MXU matmul emitting [re | im].
        out_ref[...] = jnp.dot(acc.astype(dft_dtype), dw_ref[...],
                               preferred_element_type=jnp.float32)

    # ---------------- forward ----------------
    @jax.jit
    def forward(x):
        # x: (B, size) batch of frames (or a single (size,) frame). B=1 reproduces the
        # original module exactly: outputs (1, Maxsize, 1, P).
        x = jnp.asarray(x, jnp.float32)
        if x.ndim == 1:
            x = x[None, :]
        B = x.shape[0]
        x2d = x.reshape(B, size)
        Bp = ((B + F - 1) // F) * F
        if Bp != B:
            x2d = jnp.pad(x2d, ((0, Bp - B), (0, 0)))

        flops = Bp * (2 * M * NK + 2 * KP * NP)
        bytes_accessed = (Bp * size * 4 + Bp * NP * 4
                          + fw_lane_j.size * 4 + int(dw_j.size) * dw_j.dtype.itemsize)

        out = pl.pallas_call(
            pfb_kernel,
            out_shape=jax.ShapeDtypeStruct((Bp, NP), jnp.float32),
            grid=(Bp // F,),
            in_specs=[
                pl.BlockSpec((F, size), lambda i: (i, 0)),     # per-block frames
                pl.BlockSpec((M, NK), lambda i: (0, 0)),       # FIR taps (resident)
                pl.BlockSpec((KP, NP), lambda i: (0, 0)),      # DFT weights (resident)
            ],
            out_specs=pl.BlockSpec((F, NP), lambda i: (i, 0)),
            compiler_params=pltpu.CompilerParams(
                dimension_semantics=("parallel",)),
            cost_estimate=pl.CostEstimate(
                flops=flops, transcendentals=0, bytes_accessed=bytes_accessed),
        )(x2d, fw_lane_j, dw_j)

        out = out[:B]
        re = out[:, :NK].reshape(B, Maxsize, 1, P)
        im = out[:, NK:NOUT].reshape(B, Maxsize, 1, P)
        return re, im

    return forward, (fir_w_j, cos_j, msin_j)


def reference(x, fir_w, cos_mat, msin_mat, M, P, W):
    """Pure-JAX reference of the original op sequence (Conv2d FIR -> view -> DFT)."""
    WM = M * W
    Maxsize = WM - M
    x = jnp.asarray(x, jnp.float32)
    if x.ndim == 1:
        x = x[None, :]
    B = x.shape[0]
    # input.view(1, WM, 1, P).permute(0, 3, 2, 1)[:, :, :, 0:WM-1]  (per frame)
    sig = x.reshape(B, WM, P).transpose(0, 2, 1)[:, :, :WM - 1]         # (B, P, WM-1)
    y = jnp.zeros((B, P, Maxsize), jnp.float32)
    for m in range(M):                                                  # depthwise conv
        y = y + sig[:, :, m:m + Maxsize] * fir_w[None, :, m:m + 1]
    z = y.reshape(B, Maxsize, P)                                        # torch .view re-interleave
    re = jnp.einsum('kc,bcp->bkp', cos_mat, z)
    im = jnp.einsum('kc,bcp->bkp', msin_mat, z)
    return re[:, :, None, :], im[:, :, None, :]


if __name__ == "__main__":
    M, P, W = 8, 4, 8                 # expected_input_size = M*P*W = 256, Maxsize = 56
    B = 64                            # batch of frames; frames_per_block=16 -> grid=(4,)
    size = M * P * W

    forward_f32, params = make_pfb_fir_dft(M, P, W, frames_per_block=16,
                                           dft_dtype=jnp.float32)
    forward_bf16, _ = make_pfb_fir_dft(M, P, W, frames_per_block=16,
                                       dft_dtype=jnp.bfloat16)

    x = jax.random.normal(jax.random.PRNGKey(0), (B, size), dtype=jnp.float32)

    re, im = forward_f32(x)
    jax.block_until_ready((re, im))

    re_ref, im_ref = reference(x, *params, M, P, W)
    assert re.shape == (B, M * W - M, 1, P) and im.shape == (B, M * W - M, 1, P)
    assert jnp.allclose(re, re_ref, atol=1e-3, rtol=1e-3)
    assert jnp.allclose(im, im_ref, atol=1e-3, rtol=1e-3)

    # bf16 DFT weights (v6e/v7x MXU fast path): check relative (Frobenius) error.
    re16, im16 = forward_bf16(x)
    jax.block_until_ready((re16, im16))
    rel_re = jnp.linalg.norm(re16 - re_ref) / jnp.linalg.norm(re_ref)
    rel_im = jnp.linalg.norm(im16 - im_ref) / jnp.linalg.norm(im_ref)
    assert rel_re < 1e-2 and rel_im < 1e-2

    print("KERNEL_OK")
</pallas_src>

<mosaic_0001>
module attributes {stable_mosaic.version = 11 : i64} {
  func.func @pfb_kernel(%arg0: i32, %arg1: memref<16x256xf32, #tpu.memory_space<vmem>>, %arg2: memref<8x224xf32, #tpu.memory_space<vmem>>, %arg3: memref<256x512xf32, #tpu.memory_space<vmem>>, %arg4: memref<16x512xf32, #tpu.memory_space<vmem>>) attributes {dimension_semantics = [#tpu.dimension_semantics<parallel>], iteration_bounds = array<i64: 4>, scalar_prefetch = 0 : i64, scratch_operands = 0 : i64, tpu.core_type = #tpu.core_type<tc>, window_params = [{transform_indices = @transform_0, window_bounds = array<i64: 16, 256>}, {pipeline_mode = #tpu.pipeline_mode<synchronous>, transform_indices = @transform_1, window_bounds = array<i64: 8, 224>}, {pipeline_mode = #tpu.pipeline_mode<synchronous>, transform_indices = @transform_2, window_bounds = array<i64: 256, 512>}, {transform_indices = @transform_3, window_bounds = array<i64: 16, 512>}]} {
    %c0 = arith.constant 0 : index
    %c0_0 = arith.constant 0 : index
    %0 = vector.load %arg1[%c0, %c0_0] : memref<16x256xf32, #tpu.memory_space<vmem>>, vector<16x256xf32>
    %c0_1 = arith.constant 0 : index
    %c0_2 = arith.constant 0 : index
    %1 = vector.load %arg2[%c0_1, %c0_2] : memref<8x224xf32, #tpu.memory_space<vmem>>, vector<8x224xf32>
    %2 = vector.extract_strided_slice %0 {offsets = [0, 0], sizes = [16, 224], strides = [1, 1]} : vector<16x256xf32> to vector<16x224xf32>
    %3 = vector.extract_strided_slice %1 {offsets = [0, 0], sizes = [1, 224], strides = [1, 1]} : vector<8x224xf32> to vector<1x224xf32>
    %4 = vector.broadcast %3 : vector<1x224xf32> to vector<16x224xf32>
    %5 = arith.mulf %2, %4 : vector<16x224xf32>
    %6 = vector.extract_strided_slice %0 {offsets = [0, 4], sizes = [16, 224], strides = [1, 1]} : vector<16x256xf32> to vector<16x224xf32>
    %7 = vector.extract_strided_slice %1 {offsets = [1, 0], sizes = [1, 224], strides = [1, 1]} : vector<8x224xf32> to vector<1x224xf32>
    %8 = vector.broadcast %7 : vector<1x224xf32> to vector<16x224xf32>
    %9 = arith.mulf %6, %8 : vector<16x224xf32>
    %10 = arith.addf %5, %9 : vector<16x224xf32>
    %11 = vector.extract_strided_slice %0 {offsets = [0, 8], sizes = [16, 224], strides = [1, 1]} : vector<16x256xf32> to vector<16x224xf32>
    %12 = vector.extract_strided_slice %1 {offsets = [2, 0], sizes = [1, 224], strides = [1, 1]} : vector<8x224xf32> to vector<1x224xf32>
    %13 = vector.broadcast %12 : vector<1x224xf32> to vector<16x224xf32>
    %14 = arith.mulf %11, %13 : vector<16x224xf32>
    %15 = arith.addf %10, %14 : vector<16x224xf32>
    %16 = vector.extract_strided_slice %0 {offsets = [0, 12], sizes = [16, 224], strides = [1, 1]} : vector<16x256xf32> to vector<16x224xf32>
    %17 = vector.extract_strided_slice %1 {offsets = [3, 0], sizes = [1, 224], strides = [1, 1]} : vector<8x224xf32> to vector<1x224xf32>
    %18 = vector.broadcast %17 : vector<1x224xf32> to vector<16x224xf32>
    %19 = arith.mulf %16, %18 : vector<16x224xf32>
    %20 = arith.addf %15, %19 : vector<16x224xf32>
    %21 = vector.extract_strided_slice %0 {offsets = [0, 16], sizes = [16, 224], strides = [1, 1]} : vector<16x256xf32> to vector<16x224xf32>
    %22 = vector.extract_strided_slice %1 {offsets = [4, 0], sizes = [1, 224], strides = [1, 1]} : vector<8x224xf32> to vector<1x224xf32>
    %23 = vector.broadcast %22 : vector<1x224xf32> to vector<16x224xf32>
    %24 = arith.mulf %21, %23 : vector<16x224xf32>
    %25 = arith.addf %20, %24 : vector<16x224xf32>
    %26 = vector.extract_strided_slice %0 {offsets = [0, 20], sizes = [16, 224], strides = [1, 1]} : vector<16x256xf32> to vector<16x224xf32>
    %27 = vector.extract_strided_slice %1 {offsets = [5, 0], sizes = [1, 224], strides = [1, 1]} : vector<8x224xf32> to vector<1x224xf32>
    %28 = vector.broadcast %27 : vector<1x224xf32> to vector<16x224xf32>
    %29 = arith.mulf %26, %28 : vector<16x224xf32>
    %30 = arith.addf %25, %29 : vector<16x224xf32>
    %31 = vector.extract_strided_slice %0 {offsets = [0, 24], sizes = [16, 224], strides = [1, 1]} : vector<16x256xf32> to vector<16x224xf32>
    %32 = vector.extract_strided_slice %1 {offsets = [6, 0], sizes = [1, 224], strides = [1, 1]} : vector<8x224xf32> to vector<1x224xf32>
    %33 = vector.broadcast %32 : vector<1x224xf32> to vector<16x224xf32>
    %34 = arith.mulf %31, %33 : vector<16x224xf32>
    %35 = arith.addf %30, %34 : vector<16x224xf32>
    %36 = vector.extract_strided_slice %0 {offsets = [0, 28], sizes = [16, 224], strides = [1, 1]} : vector<16x256xf32> to vector<16x224xf32>
    %37 = vector.extract_strided_slice %1 {offsets = [7, 0], sizes = [1, 224], strides = [1, 1]} : vector<8x224xf32> to vector<1x224xf32>
    %38 = vector.broadcast %37 : vector<1x224xf32> to vector<16x224xf32>
    %39 = arith.mulf %36, %38 : vector<16x224xf32>
    %40 = arith.addf %35, %39 : vector<16x224xf32>
    %cst = arith.constant 0.000000e+00 : f32
    %41 = vector.broadcast %cst : f32 to vector<16x32xf32>
    %42 = tpu.concatenate %40, %41 in 1 : vector<16x224xf32>, vector<16x32xf32> -> vector<16x256xf32>
    %c0_3 = arith.constant 0 : index
    %c0_4 = arith.constant 0 : index
    %43 = vector.load %arg3[%c0_3, %c0_4] : memref<256x512xf32, #tpu.memory_space<vmem>>, vector<256x512xf32>
    %cst_5 = arith.constant dense<0.000000e+00> : vector<16x512xf32>
    %44 = tpu.matmul %42, %43, %cst_5 {dimension_numbers = #tpu.dot_dimension_numbers<[1], [0], [0], [1], [0, 0, 1, 1], [], []>} : vector<16x256xf32>, vector<256x512xf32>, vector<16x512xf32> -> vector<16x512xf32>
    %c0_6 = arith.constant 0 : index
    %c0_7 = arith.constant 0 : index
    %45 = vector.load %arg4[%c0_6, %c0_7] : memref<16x512xf32, #tpu.memory_space<vmem>>, vector<16x512xf32>
    tpu.vector_store %arg4[%c0_6, %c0_7], %44 {strides = array<i32>} : memref<16x512xf32, #tpu.memory_space<vmem>>, vector<16x512xf32>,
    return
  }
  func.func @transform_0(%arg0: i32) -> (i32, i32) {
    %c0_i32 = arith.constant 0 : i32
    %c0_i32_0 = arith.constant 0 : i32
    return %arg0, %c0_i32 : i32, i32
  }
  func.func @transform_1(%arg0: i32) -> (i32, i32) {
    %c0_i32 = arith.constant 0 : i32
    %c0_i32_0 = arith.constant 0 : i32
    %c0_i32_1 = arith.constant 0 : i32
    return %c0_i32, %c0_i32_0 : i32, i32
  }
  func.func @transform_2(%arg0: i32) -> (i32, i32) {
    %c0_i32 = arith.constant 0 : i32
    %c0_i32_0 = arith.constant 0 : i32
    %c0_i32_1 = arith.constant 0 : i32
    return %c0_i32, %c0_i32_0 : i32, i32
  }
  func.func @transform_3(%arg0: i32) -> (i32, i32) {
    %c0_i32 = arith.constant 0 : i32
    %c0_i32_0 = arith.constant 0 : i32
    return %arg0, %c0_i32 : i32, i32
  }
}

</mosaic_0001>

<llo_original>
// kernel: forward.1
$region0: #{forward.1}
  #allocation0 [shape = 'u32[]', space=smem, size = 0x4, offset = 0x4, fixed_abs, tag = 'smem constant byte address 0x4 - core index']
  #allocation1 [shape = 'u32[144,128]{1,0:T(1,128)}', space=vmem, size = 0x12000, scoped, tag = 'internal scratch']
  %s0 = inlined_call_operand.hbm [shape: f32[64,256], index: 0, kind: input, shape index: {}]
  %s1 = inlined_call_operand.hbm [shape: f32[8,224], index: 1, kind: input, shape index: {}]
  %s2 = inlined_call_operand.hbm [shape: f32[256,512], index: 2, kind: input, shape index: {}]
  %s3 = inlined_call_operand.vmem [shape: f32[64,512], index: 3, kind: output, shape index: {}]
  %s4 = sld [smem:[#allocation0]]
  $region57: #{forward.1} parent=0
    _
  %s6 = ssub.s32 1, %s4
  %s7 = scalar_select 0, %s6, %s4
  $region1: #{forward.1} parent=0
    #allocation2 [shape = 'u8[32768]{0}', space=vmem, size = 0x8000, scoped, tag = 'input window, operand 0']
    #allocation3 [shape = 's32[2]{0}', space=sflag, size = 0x8, scoped, tag = 'scoped memory for forward.1']
    #allocation4 [shape = 'u8[8192]{0}', space=vmem, size = 0x2000, scoped, tag = 'input window, operand 1, single buffered']
    #allocation5 [shape = 's32[1]{0}', space=sflag, size = 0x4, scoped, tag = 'scoped memory for forward.1']
    #allocation6 [shape = 'u8[524288]{0}', space=vmem, size = 0x80000, scoped, tag = 'input window, operand 2, single buffered']
    %8 = vsyncpa [#allocation3], 0
    %s9 = scalar_lea.sflag [#allocation3], 1
    %10 = vsyncpa %s9, 0
    %11 = vsyncpa [#allocation5], 0
    loop: start=0, step=1, limit=6
    $region2: #{forward.1} parent=1 // loop_pre_header
      _
    $region3: #{forward.1} parent=1 // loop_header
      %s13 = sphi 0, %s17
      %p14 = scmp.ge.s32.totalorder %s13, 6
      %s23 = sphi 0, %s25
      %s26 = sphi 0, %s23
      %s27 = sphi 0, %s26
      %s43 = sphi 0, %s27
      %s47 = sphi 0, %s47
      %s49 = sphi 0, %s47
      %s50 = sphi 0, %s49
      %s64 = sphi 0, %s50
      %s68 = sphi 0, %s68
      %s70 = sphi 0, %s68
      %s71 = sphi 0, %s70
      %s85 = sphi 0, %s71
      %s91 = sphi 0, %s93
      %s94 = sphi 0, %s91
      %s95 = sphi 0, %s94
      %s111 = sphi 0, %s95
    $region4: #{forward.1} parent=1 // loop_header_branch
      %16 = sbr.rel (%p14) target = $region8
    $region5: #{forward.1} parent=1 // loop_body
      %s18 = ssub.s32 %s13, 1
      %s19 = ssub.s32 %s13, 2
      %s20 = sadd.s32 %s13, 1
      %s21 = ssub.s32 %s13, %s20
      %p22 = scmp.eq.s32.totalorder %s21, 0
      %s24 = sadd.s32 %s23, 1
      %s25 = scalar_select %p22, %s23, %s24
      %p28 = pneg %p22
      %p29 = scmp.eq.s32.totalorder %s13, 3
      %p30 = por %p28, %p29
      %p31 = scmp.ne.s32.totalorder %s23, %s26
      %p32 = scmp.eq.s32.totalorder %s13, 0
      %p33 = por %p31, %p32
      %p34 = scmp.ne.s32.totalorder %s23, %s26
      %p35 = scmp.eq.s32.totalorder %s18, 3
      %p36 = por %p34, %p35
      %p37 = scmp.ne.s32.totalorder %s26, %s27
      %p38 = scmp.eq.s32.totalorder %s18, 0
      %p39 = por %p37, %p38
      %p40 = scmp.ne.s32.totalorder %s26, %s27
      %p41 = scmp.eq.s32.totalorder %s19, 3
      %p42 = por %p40, %p41
      %p44 = scmp.ne.s32.totalorder %s27, %s43
      %p45 = scmp.eq.s32.totalorder %s19, 0
      %p46 = por %p44, %p45
      %s48 = sadd.s32 %s47, 1
      %p51 = scmp.eq.s32.totalorder %s13, 3
      %p52 = scmp.ne.s32.totalorder %s47, %s49
      %p53 = scmp.eq.s32.totalorder %s13, 0
      %p54 = por %p52, %p53
      %p55 = scmp.ne.s32.totalorder %s47, %s49
      %p56 = scmp.eq.s32.totalorder %s18, 3
      %p57 = por %p55, %p56
      %p58 = scmp.ne.s32.totalorder %s49, %s50
      %p59 = scmp.eq.s32.totalorder %s18, 0
      %p60 = por %p58, %p59
      %p61 = scmp.ne.s32.totalorder %s49, %s50
      %p62 = scmp.eq.s32.totalorder %s19, 3
      %p63 = por %p61, %p62
      %p65 = scmp.ne.s32.totalorder %s50, %s64
      %p66 = scmp.eq.s32.totalorder %s19, 0
      %p67 = por %p65, %p66
      %s69 = sadd.s32 %s68, 1
      %p72 = scmp.eq.s32.totalorder %s13, 3
      %p73 = scmp.ne.s32.totalorder %s68, %s70
      %p74 = scmp.eq.s32.totalorder %s13, 0
      %p75 = por %p73, %p74
      %p76 = scmp.ne.s32.totalorder %s68, %s70
      %p77 = scmp.eq.s32.totalorder %s18, 3
      %p78 = por %p76, %p77
      %p79 = scmp.ne.s32.totalorder %s70, %s71
      %p80 = scmp.eq.s32.totalorder %s18, 0
      %p81 = por %p79, %p80
      %p82 = scmp.ne.s32.totalorder %s70, %s71
      %p83 = scmp.eq.s32.totalorder %s19, 3
      %p84 = por %p82, %p83
      %p86 = scmp.ne.s32.totalorder %s71, %s85
      %p87 = scmp.eq.s32.totalorder %s19, 0
      %p88 = por %p86, %p87
      %s89 = ssub.s32 %s13, %s20
      %p90 = scmp.eq.s32.totalorder %s89, 0
      %s92 = sadd.s32 %s91, 1
      %s93 = scalar_select %p90, %s91, %s92
      %p96 = pneg %p90
      %p97 = scmp.eq.s32.totalorder %s13, 3
      %p98 = por %p96, %p97
      %p99 = scmp.ne.s32.totalorder %s91, %s94
      %p100 = scmp.eq.s32.totalorder %s13, 0
      %p101 = por %p99, %p100
      %p102 = scmp.ne.s32.totalorder %s91, %s94
      %p103 = scmp.eq.s32.totalorder %s18, 3
      %p104 = por %p102, %p103
      %p105 = scmp.ne.s32.totalorder %s94, %s95
      %p106 = scmp.eq.s32.totalorder %s18, 0
      %p107 = por %p105, %p106
      %p108 = scmp.ne.s32.totalorder %s94, %s95
      %p109 = scmp.eq.s32.totalorder %s19, 3
      %p110 = por %p108, %p109
      %p112 = scmp.ne.s32.totalorder %s95, %s111
      %p113 = scmp.eq.s32.totalorder %s19, 0
      %p114 = por %p112, %p113
      %p115 = scmp.le.s32.totalorder 1, %s13
      %p116 = scmp.lt.s32.totalorder %s13, 5
      %p117 = pnand %p115, %p116
      %p118 = pneg %p117
      // Predicated region
      $region9: #{forward.1} parent=5 // pred_check
        _
      $region10: #{forward.1} parent=5 // pred_check_branch
        %120 = sbr.rel (%p117) target = $region12
      $region11: #{forward.1} parent=5 // pred_region
        %s121 = ssub.s32 %s13, 1
        // Predicated region
        $region13: #{forward.1} parent=11 // pred_check
          %p122 = pneg %p60
        $region14: #{forward.1} parent=11 // pred_check_branch
          %124 = sbr.rel (%p122) target = $region16
        $region15: #{forward.1} parent=11 // pred_region
          %s126 = ssub.s32 256, 256
          %127 = vsyncadd [#allocation5], %s126
          %s129 = sshll.u32 [#allocation4], 4
          %s130 = int_to_ptr.vmem [resolvable:$true] %s129
          %132 = dma.hbm_to_vmem [thread:$0]  %s1, 256, %s130, [#allocation5]
        $region16: #{forward.1} parent=11 // pred_fallthru
          _
        // Predicated region
        $region17: #{forward.1} parent=11 // pred_check
          %p133 = pneg %p81
        $region18: #{forward.1} parent=11 // pred_check_branch
          %135 = sbr.rel (%p133) target = $region20
        $region19: #{forward.1} parent=11 // pred_region
          %s137 = ssub.s32 16384, 16384
          %138 = vsyncadd [#allocation5], %s137
          %s139 = sshll.u32 [#allocation6], 4
          %s140 = int_to_ptr.vmem [resolvable:$true] %s139
          %145 = dma.hbm_to_vmem [thread:$0]  %s2, 16384, %s140, [#allocation5], 512, 512, 32
        $region20: #{forward.1} parent=11 // pred_fallthru
          _
      $region12: #{forward.1} parent=5 // pred_fallthru
        _
      %p146 = scmp.lt.s32.totalorder %s13, 4
      // Predicated region
      $region21: #{forward.1} parent=5 // pred_check
        %p147 = pneg %p146
      $region22: #{forward.1} parent=5 // pred_check_branch
        %149 = sbr.rel (%p147) target = $region24
      $region23: #{forward.1} parent=5 // pred_region
        // Predicated region
        $region25: #{forward.1} parent=23 // pred_check
          %p150 = pneg %p33
        $region26: #{forward.1} parent=23 // pred_check_branch
          %152 = sbr.rel (%p150) target = $region28
        $region27: #{forward.1} parent=23 // pred_region
          %s153 = sand.u32 %s23, 1
          %s154 = scalar_lea.sflag [#allocation3], %s153
          %s155 = sand.u32 %s23, 1
          %s156 = smul.addr %s155, 32
          %s157 = scalar_lea.vmem [#allocation2], %s156
          %s158 = smul.u32 2, %s13
          %s160 = ssub.s32 512, 512
          %161 = vsyncadd %s154, %s160
          %s162 = smul.addr %s158, 2
          %s163 = smul.addr %s162, 128
          %s164 = scalar_lea.hbm %s0, %s163
          %s165 = sshll.u32 %s157, 4
          %s166 = int_to_ptr.vmem [resolvable:$true] %s165
          %171 = dma.hbm_to_vmem [thread:$0]  %s164, 512, %s166, %s154, 256, 256, 16
        $region28: #{forward.1} parent=23 // pred_fallthru
          _
      $region24: #{forward.1} parent=5 // pred_fallthru
        _
      %p172 = scmp.le.s32.totalorder 1, %s13
      %p173 = scmp.lt.s32.totalorder %s13, 5
      %p174 = pnand %p172, %p173
      %p175 = pneg %p174
      // Predicated region
      $region29: #{forward.1} parent=5 // pred_check
        _
      $region30: #{forward.1} parent=5 // pred_check_branch
        %177 = sbr.rel (%p174) target = $region32
      $region31: #{forward.1} parent=5 // pred_region
        %s178 = ssub.s32 %s13, 1
        %s179 = sand.u32 %s26, 1
        %s180 = scalar_lea.sflag [#allocation3], %s179
        %s181 = sand.u32 %s26, 1
        %s182 = smul.addr %s181, 32
        %s183 = scalar_lea.vmem [#allocation2], %s182
        // Predicated region
        $region33: #{forward.1} parent=31 // pred_check
          %p184 = pneg %p39
        $region34: #{forward.1} parent=31 // pred_check_branch
          %186 = sbr.rel (%p184) target = $region36
        $region35: #{forward.1} parent=31 // pred_region
          %187 = dma.done %s180, 512
        $region36: #{forward.1} parent=31 // pred_fallthru
          _
        // Predicated region
        $region37: #{forward.1} parent=31 // pred_check
          %p188 = pneg %p60
        $region38: #{forward.1} parent=31 // pred_check_branch
          %190 = sbr.rel (%p188) target = $region40
        $region39: #{forward.1} parent=31 // pred_region
          %191 = dma.done [#allocation5], 256
        $region40: #{forward.1} parent=31 // pred_fallthru
          _
        // Predicated region
        $region41: #{forward.1} parent=31 // pred_check
          %p192 = pneg %p81
        $region42: #{forward.1} parent=31 // pred_check_branch
          %194 = sbr.rel (%p192) target = $region44
        $region43: #{forward.1} parent=31 // pred_region
          %195 = dma.done [#allocation5], 16384
        $region44: #{forward.1} parent=31 // pred_fallthru
          _
        %s196 = sand.u32 %s26, 1
        %s197 = scalar_lea.sflag [#allocation3], %s196
        %s198 = sand.u32 %s26, 1
        %s199 = smul.addr %s198, 32
        %s200 = scalar_lea.vmem [#allocation2], %s199
        %p201 = pneg %p39
        %p202 = pneg %p36
        %p203 = pneg %p60
        %p204 = pneg %p57
        %p205 = pneg %p81
        %p206 = pneg %p78
        %p207 = pneg %p107
        %p208 = pneg %p104
        %s209 = smul.u32 2, %s18
        %p210 = scmp.lt.s32.totalorder %s209, 7
        %s211 = scalar_select %p210, %s209, 7
        %s212 = smul.addr %s211, 4
        %s213 = smul.addr %s212, 8
        %s214 = scalar_lea.vmem %s3, %s213
        %s215 = smul.u32 2, %s18
        %s216 = smul.u32 2, %s18
        %p217 = scmp.lt.s32.totalorder %s216, 7
        %s218 = scalar_select %p217, %s216, 7
        %s219 = smul.addr %s218, 4
        %s220 = smul.addr %s219, 8
        %s221 = scalar_lea.vmem %s3, %s220
        %s222 = smul.u32 2, %s18
        %v223 = vld [vmem:[%s183] sm:$0xff]
        %v224 = vld [vmem:[%s183 + $0x8] sm:$0xff]
        %v225 = vld [vmem:[%s183 + $0x10] sm:$0xff]
        %v226 = vld [vmem:[%s183 + $0x18] sm:$0xff]
        %v227 = vld [vmem:[#allocation4] sm:$0xff]
        %v228 = vld [vmem:[#allocation4 + $0x8] sm:$0xff]
        %v229 = vlaneseq
        %v230 = vshrl.u32 %v229, 7
        %v231 = vsub.s32 0, %v230
        %v232 = vrot.slane %v227, %v231
        %v233 = vlaneseq
        %v234 = vshrl.u32 %v233, 7
        %v235 = vsub.s32 0, %v234
        %v236 = vrot.slane %v228, %v235
        %v237 = vmul.f32 %v223, %v232
        %v238 = vmul.f32 %v224, %v236
        %v239 = vmul.f32 %v225, %v232
        %v240 = vmul.f32 %v226, %v236
        %v241 = vlaneseq
        %v242 = vshrl.u32 %v241, 7
        %v243 = vsub.s32 1, %v242
        %v244 = vrot.slane %v227, %v243
        %v245 = vlaneseq
        %v246 = vshrl.u32 %v245, 7
        %v247 = vsub.s32 1, %v246
        %v248 = vrot.slane %v228, %v247
        %251 = vrot.lane.b32.xlu0 %v244, 4
        %v252 = vpop.permute.xlu0 %251
        %253 = vrot.lane.b32.xlu0 %v248, 4
        %v254 = vpop.permute.xlu0 %253
        %vm255 = vcmask 31744
        %v256 = vsel %vm255, %v252, %v254
        %v259 = vmul.f32 %v223, %v252
        %v260 = vmul.f32 %v224, %v256
        %v261 = vmul.f32 %v225, %v252
        %v262 = vmul.f32 %v226, %v256
        %267 = vrot.lane.b32.xlu0 %v259, 124
        %v268 = vpop.permute.xlu0 %267
        %269 = vrot.lane.b32.xlu0 %v260, 124
        %v270 = vpop.permute.xlu0 %269
        %271 = vrot.lane.b32.xlu0 %v261, 124
        %v272 = vpop.permute.xlu0 %271
        %273 = vrot.lane.b32.xlu0 %v262, 124
        %v274 = vpop.permute.xlu0 %273
        %vm275 = vcmask 1014784
        %v276 = vsel %vm275, %v268, %v270
        %v277 = vsel %vm275, %v272, %v274
        %v282 = vadd.f32 %v237, %v276
        %v283 = vadd.f32 %v238, %v270
        %v284 = vadd.f32 %v239, %v277
        %v285 = vadd.f32 %v240, %v274
        %v286 = vlaneseq
        %v287 = vshrl.u32 %v286, 7
        %v288 = vsub.s32 2, %v287
        %v289 = vrot.slane %v227, %v288
        %v290 = vlaneseq
        %v291 = vshrl.u32 %v290, 7
        %v292 = vsub.s32 2, %v291
        %v293 = vrot.slane %v228, %v292
        %296 = vrot.lane.b32.xlu0 %v289, 8
        %v297 = vpop.permute.xlu0 %296
        %298 = vrot.lane.b32.xlu0 %v293, 8
        %v299 = vpop.permute.xlu0 %298
        %vm300 = vcmask 64512
        %v301 = vsel %vm300, %v297, %v299
        %v304 = vmul.f32 %v223, %v297
        %v305 = vmul.f32 %v224, %v301
        %v306 = vmul.f32 %v225, %v297
        %v307 = vmul.f32 %v226, %v301
        %312 = vrot.lane.b32.xlu0 %v304, 120
        %v313 = vpop.permute.xlu0 %312
        %314 = vrot.lane.b32.xlu0 %v305, 120
        %v315 = vpop.permute.xlu0 %314
        %316 = vrot.lane.b32.xlu0 %v306, 120
        %v317 = vpop.permute.xlu0 %316
        %318 = vrot.lane.b32.xlu0 %v307, 120
        %v319 = vpop.permute.xlu0 %318
        %vm320 = vcmask 982016
        %v321 = vsel %vm320, %v313, %v315
        %v322 = vsel %vm320, %v317, %v319
        %v327 = vadd.f32 %v282, %v321
        %v328 = vadd.f32 %v283, %v315
        %v329 = vadd.f32 %v284, %v322
        %v330 = vadd.f32 %v285, %v319
        %v331 = vlaneseq
        %v332 = vshrl.u32 %v331, 7
        %v333 = vsub.s32 3, %v332
        %v334 = vrot.slane %v227, %v333
        %v335 = vlaneseq
        %v336 = vshrl.u32 %v335, 7
        %v337 = vsub.s32 3, %v336
        %v338 = vrot.slane %v228, %v337
        %341 = vrot.lane.b32.xlu0 %v334, 12
        %v342 = vpop.permute.xlu0 %341
        %343 = vrot.lane.b32.xlu0 %v338, 12
        %v344 = vpop.permute.xlu0 %343
        %vm345 = vcmask 97280
        %v346 = vsel %vm345, %v342, %v344
        %v349 = vmul.f32 %v223, %v342
        %v350 = vmul.f32 %v224, %v346
        %v351 = vmul.f32 %v225, %v342
        %v352 = vmul.f32 %v226, %v346
        %357 = vrot.lane.b32.xlu0 %v349, 116
        %v358 = vpop.permute.xlu0 %357
        %359 = vrot.lane.b32.xlu0 %v350, 116
        %v360 = vpop.permute.xlu0 %359
        %361 = vrot.lane.b32.xlu0 %v351, 116
        %v362 = vpop.permute.xlu0 %361
        %363 = vrot.lane.b32.xlu0 %v352, 116
        %v364 = vpop.permute.xlu0 %363
        %vm365 = vcmask 949248
        %v366 = vsel %vm365, %v358, %v360
        %v367 = vsel %vm365, %v362, %v364
        %v372 = vadd.f32 %v327, %v366
        %v373 = vadd.f32 %v328, %v360
        %v374 = vadd.f32 %v329, %v367
        %v375 = vadd.f32 %v330, %v364
        %v376 = vlaneseq
        %v377 = vshrl.u32 %v376, 7
        %v378 = vsub.s32 4, %v377
        %v379 = vrot.slane %v227, %v378
        %v380 = vlaneseq
        %v381 = vshrl.u32 %v380, 7
        %v382 = vsub.s32 4, %v381
        %v383 = vrot.slane %v228, %v382
        %386 = vrot.lane.b32.xlu0 %v379, 16
        %v387 = vpop.permute.xlu0 %386
        %388 = vrot.lane.b32.xlu0 %v383, 16
        %v389 = vpop.permute.xlu0 %388
        %vm390 = vcmask 130048
        %v391 = vsel %vm390, %v387, %v389
        %v394 = vmul.f32 %v223, %v387
        %v395 = vmul.f32 %v224, %v391
        %v396 = vmul.f32 %v225, %v387
        %v397 = vmul.f32 %v226, %v391
        %402 = vrot.lane.b32.xlu0 %v394, 112
        %v403 = vpop.permute.xlu0 %402
        %404 = vrot.lane.b32.xlu0 %v395, 112
        %v405 = vpop.permute.xlu0 %404
        %406 = vrot.lane.b32.xlu0 %v396, 112
        %v407 = vpop.permute.xlu0 %406
        %408 = vrot.lane.b32.xlu0 %v397, 112
        %v409 = vpop.permute.xlu0 %408
        %vm410 = vcmask 916480
        %v411 = vsel %vm410, %v403, %v405
        %v412 = vsel %vm410, %v407, %v409
        %v417 = vadd.f32 %v372, %v411
        %v418 = vadd.f32 %v373, %v405
        %v419 = vadd.f32 %v374, %v412
        %v420 = vadd.f32 %v375, %v409
        %v421 = vlaneseq
        %v422 = vshrl.u32 %v421, 7
        %v423 = vsub.s32 5, %v422
        %v424 = vrot.slane %v227, %v423
        %v425 = vlaneseq
        %v426 = vshrl.u32 %v425, 7
        %v427 = vsub.s32 5, %v426
        %v428 = vrot.slane %v228, %v427
        %431 = vrot.lane.b32.xlu0 %v424, 20
        %v432 = vpop.permute.xlu0 %431
        %433 = vrot.lane.b32.xlu0 %v428, 20
        %v434 = vpop.permute.xlu0 %433
        %vm435 = vcmask 162816
        %v436 = vsel %vm435, %v432, %v434
        %v439 = vmul.f32 %v223, %v432
        %v440 = vmul.f32 %v224, %v436
        %v441 = vmul.f32 %v225, %v432
        %v442 = vmul.f32 %v226, %v436
        %447 = vrot.lane.b32.xlu0 %v439, 108
        %v448 = vpop.permute.xlu0 %447
        %449 = vrot.lane.b32.xlu0 %v440, 108
        %v450 = vpop.permute.xlu0 %449
        %451 = vrot.lane.b32.xlu0 %v441, 108
        %v452 = vpop.permute.xlu0 %451
        %453 = vrot.lane.b32.xlu0 %v442, 108
        %v454 = vpop.permute.xlu0 %453
        %vm455 = vcmask 883712
        %v456 = vsel %vm455, %v448, %v450
        %v457 = vsel %vm455, %v452, %v454
        %v462 = vadd.f32 %v417, %v456
        %v463 = vadd.f32 %v418, %v450
        %v464 = vadd.f32 %v419, %v457
        %v465 = vadd.f32 %v420, %v454
        %v466 = vlaneseq
        %v467 = vshrl.u32 %v466, 7
        %v468 = vsub.s32 6, %v467
        %v469 = vrot.slane %v227, %v468
        %v470 = vlaneseq
        %v471 = vshrl.u32 %v470, 7
        %v472 = vsub.s32 6, %v471
        %v473 = vrot.slane %v228, %v472
        %476 = vrot.lane.b32.xlu0 %v469, 24
        %v477 = vpop.permute.xlu0 %476
        %478 = vrot.lane.b32.xlu0 %v473, 24
        %v479 = vpop.permute.xlu0 %478
        %vm480 = vcmask 195584
        %v481 = vsel %vm480, %v477, %v479
        %v484 = vmul.f32 %v223, %v477
        %v485 = vmul.f32 %v224, %v481
        %v486 = vmul.f32 %v225, %v477
        %v487 = vmul.f32 %v226, %v481
        %492 = vrot.lane.b32.xlu0 %v484, 104
        %v493 = vpop.permute.xlu0 %492
        %494 = vrot.lane.b32.xlu0 %v485, 104
        %v495 = vpop.permute.xlu0 %494
        %496 = vrot.lane.b32.xlu0 %v486, 104
        %v497 = vpop.permute.xlu0 %496
        %498 = vrot.lane.b32.xlu0 %v487, 104
        %v499 = vpop.permute.xlu0 %498
        %vm500 = vcmask 850944
        %v501 = vsel %vm500, %v493, %v495
        %v502 = vsel %vm500, %v497, %v499
        %v507 = vadd.f32 %v462, %v501
        %v508 = vadd.f32 %v463, %v495
        %v509 = vadd.f32 %v464, %v502
        %v510 = vadd.f32 %v465, %v499
        %v511 = vlaneseq
        %v512 = vshrl.u32 %v511, 7
        %v513 = vsub.s32 7, %v512
        %v514 = vrot.slane %v227, %v513
        %v515 = vlaneseq
        %v516 = vshrl.u32 %v515, 7
        %v517 = vsub.s32 7, %v516
        %v518 = vrot.slane %v228, %v517
        %521 = vrot.lane.b32.xlu0 %v514, 28
        %v522 = vpop.permute.xlu0 %521
        %523 = vrot.lane.b32.xlu0 %v518, 28
        %v524 = vpop.permute.xlu0 %523
        %vm525 = vcmask 228352
        %v526 = vsel %vm525, %v522, %v524
        %v529 = vmul.f32 %v223, %v522
        %v530 = vmul.f32 %v224, %v526
        %v531 = vmul.f32 %v225, %v522
        %v532 = vmul.f32 %v226, %v526
        %537 = vrot.lane.b32.xlu0 %v529, 100
        %v538 = vpop.permute.xlu0 %537
        %539 = vrot.lane.b32.xlu0 %v530, 100
        %v540 = vpop.permute.xlu0 %539
        %541 = vrot.lane.b32.xlu0 %v531, 100
        %v542 = vpop.permute.xlu0 %541
        %543 = vrot.lane.b32.xlu0 %v532, 100
        %v544 = vpop.permute.xlu0 %543
        %vm545 = vcmask 818176
        %v546 = vsel %vm545, %v538, %v540
        %v547 = vsel %vm545, %v542, %v544
        %v552 = vadd.f32 %v507, %v546
        %v553 = vadd.f32 %v508, %v540
        %v554 = vadd.f32 %v509, %v547
        %v555 = vadd.f32 %v510, %v544
        %vm556 = vcmask 785408
        %v557 = vsel %vm556, %v553, 0.0
        %v558 = vsel %vm556, %v555, 0.0
        %v559 = vld [vmem:[#allocation6] sm:$0xff]
        %v560 = vld [vmem:[#allocation6 + $0x8] sm:$0xff]
        %v561 = vld [vmem:[#allocation6 + $0x10] sm:$0xff]
        %v562 = vld [vmem:[#allocation6 + $0x18] sm:$0xff]
        %v563 = vld [vmem:[#allocation6 + $0x20] sm:$0xff]
        %v564 = vld [vmem:[#allocation6 + $0x28] sm:$0xff]
        %v565 = vld [vmem:[#allocation6 + $0x30] sm:$0xff]
        %v566 = vld [vmem:[#allocation6 + $0x38] sm:$0xff]
        %v567 = vld [vmem:[#allocation6 + $0x40] sm:$0xff]
        %v568 = vld [vmem:[#allocation6 + $0x48] sm:$0xff]
        %v569 = vld [vmem:[#allocation6 + $0x50] sm:$0xff]
        %v570 = vld [vmem:[#allocation6 + $0x58] sm:$0xff]
        %v571 = vld [vmem:[#allocation6 + $0x60] sm:$0xff]
        %v572 = vld [vmem:[#allocation6 + $0x68] sm:$0xff]
        %v573 = vld [vmem:[#allocation6 + $0x70] sm:$0xff]
        %v574 = vld [vmem:[#allocation6 + $0x78] sm:$0xff]
        %v575 = vld [vmem:[#allocation6 + $0x80] sm:$0xff]
        %v576 = vld [vmem:[#allocation6 + $0x88] sm:$0xff]
        %v577 = vld [vmem:[#allocation6 + $0x90] sm:$0xff]
        %v578 = vld [vmem:[#allocation6 + $0x98] sm:$0xff]
        %v579 = vld [vmem:[#allocation6 + $0xa0] sm:$0xff]
        %v580 = vld [vmem:[#allocation6 + $0xa8] sm:$0xff]
        %v581 = vld [vmem:[#allocation6 + $0xb0] sm:$0xff]
        %v582 = vld [vmem:[#allocation6 + $0xb8] sm:$0xff]
        %v583 = vld [vmem:[#allocation6 + $0xc0] sm:$0xff]
        %v584 = vld [vmem:[#allocation6 + $0xc8] sm:$0xff]
        %v585 = vld [vmem:[#allocation6 + $0xd0] sm:$0xff]
        %v586 = vld [vmem:[#allocation6 + $0xd8] sm:$0xff]
        %v587 = vld [vmem:[#allocation6 + $0xe0] sm:$0xff]
        %v588 = vld [vmem:[#allocation6 + $0xe8] sm:$0xff]
        %v589 = vld [vmem:[#allocation6 + $0xf0] sm:$0xff]
        %v590 = vld [vmem:[#allocation6 + $0xf8] sm:$0xff]
        %v591 = vld [vmem:[#allocation6 + $0x100] sm:$0xff]
        %v592 = vld [vmem:[#allocation6 + $0x108] sm:$0xff]
        %v593 = vld [vmem:[#allocation6 + $0x110] sm:$0xff]
        %v594 = vld [vmem:[#allocation6 + $0x118] sm:$0xff]
        %v595 = vld [vmem:[#allocation6 + $0x120] sm:$0xff]
        %v596 = vld [vmem:[#allocation6 + $0x128] sm:$0xff]
        %v597 = vld [vmem:[#allocation6 + $0x130] sm:$0xff]
        %v598 = vld [vmem:[#allocation6 + $0x138] sm:$0xff]
        %v599 = vld [vmem:[#allocation6 + $0x140] sm:$0xff]
        %v600 = vld [vmem:[#allocation6 + $0x148] sm:$0xff]
        %v601 = vld [vmem:[#allocation6 + $0x150] sm:$0xff]
        %v602 = vld [vmem:[#allocation6 + $0x158] sm:$0xff]
        %v603 = vld [vmem:[#allocation6 + $0x160] sm:$0xff]
        %v604 = vld [vmem:[#allocation6 + $0x168] sm:$0xff]
        %v605 = vld [vmem:[#allocation6 + $0x170] sm:$0xff]
        %v606 = vld [vmem:[#allocation6 + $0x178] sm:$0xff]
        %v607 = vld [vmem:[#allocation6 + $0x180] sm:$0xff]
        %v608 = vld [vmem:[#allocation6 + $0x188] sm:$0xff]
        %v609 = vld [vmem:[#allocation6 + $0x190] sm:$0xff]
        %v610 = vld [vmem:[#allocation6 + $0x198] sm:$0xff]
        %v611 = vld [vmem:[#allocation6 + $0x1a0] sm:$0xff]
        %v612 = vld [vmem:[#allocation6 + $0x1a8] sm:$0xff]
        %v613 = vld [vmem:[#allocation6 + $0x1b0] sm:$0xff]
        %v614 = vld [vmem:[#allocation6 + $0x1b8] sm:$0xff]
        %v615 = vld [vmem:[#allocation6 + $0x1c0] sm:$0xff]
        %v616 = vld [vmem:[#allocation6 + $0x1c8] sm:$0xff]
        %v617 = vld [vmem:[#allocation6 + $0x1d0] sm:$0xff]
        %v618 = vld [vmem:[#allocation6 + $0x1d8] sm:$0xff]
        %v619 = vld [vmem:[#allocation6 + $0x1e0] sm:$0xff]
        %v620 = vld [vmem:[#allocation6 + $0x1e8] sm:$0xff]
        %v621 = vld [vmem:[#allocation6 + $0x1f0] sm:$0xff]
        %v622 = vld [vmem:[#allocation6 + $0x1f8] sm:$0xff]
        %v623 = vld [vmem:[#allocation6 + $0x200] sm:$0xff]
        %v624 = vld [vmem:[#allocation6 + $0x208] sm:$0xff]
        %v625 = vld [vmem:[#allocation6 + $0x210] sm:$0xff]
        %v626 = vld [vmem:[#allocation6 + $0x218] sm:$0xff]
        %v627 = vld [vmem:[#allocation6 + $0x220] sm:$0xff]
        %v628 = vld [vmem:[#allocation6 + $0x228] sm:$0xff]
        %v629 = vld [vmem:[#allocation6 + $0x230] sm:$0xff]
        %v630 = vld [vmem:[#allocation6 + $0x238] sm:$0xff]
        %v631 = vld [vmem:[#allocation6 + $0x240] sm:$0xff]
        %v632 = vld [vmem:[#allocation6 + $0x248] sm:$0xff]
        %v633 = vld [vmem:[#allocation6 + $0x250] sm:$0xff]
        %v634 = vld [vmem:[#allocation6 + $0x258] sm:$0xff]
        %v635 = vld [vmem:[#allocation6 + $0x260] sm:$0xff]
        %v636 = vld [vmem:[#allocation6 + $0x268] sm:$0xff]
        %v637 = vld [vmem:[#allocation6 + $0x270] sm:$0xff]
        %v638 = vld [vmem:[#allocation6 + $0x278] sm:$0xff]
        %v639 = vld [vmem:[#allocation6 + $0x280] sm:$0xff]
        %v640 = vld [vmem:[#allocation6 + $0x288] sm:$0xff]
        %v641 = vld [vmem:[#allocation6 + $0x290] sm:$0xff]
        %v642 = vld [vmem:[#allocation6 + $0x298] sm:$0xff]
        %v643 = vld [vmem:[#allocation6 + $0x2a0] sm:$0xff]
        %v644 = vld [vmem:[#allocation6 + $0x2a8] sm:$0xff]
        %v645 = vld [vmem:[#allocation6 + $0x2b0] sm:$0xff]
        %v646 = vld [vmem:[#allocation6 + $0x2b8] sm:$0xff]
        %v647 = vld [vmem:[#allocation6 + $0x2c0] sm:$0xff]
        %v648 = vld [vmem:[#allocation6 + $0x2c8] sm:$0xff]
        %v649 = vld [vmem:[#allocation6 + $0x2d0] sm:$0xff]
        %v650 = vld [vmem:[#allocation6 + $0x2d8] sm:$0xff]
        %v651 = vld [vmem:[#allocation6 + $0x2e0] sm:$0xff]
        %v652 = vld [vmem:[#allocation6 + $0x2e8] sm:$0xff]
        %v653 = vld [vmem:[#allocation6 + $0x2f0] sm:$0xff]
        %v654 = vld [vmem:[#allocation6 + $0x2f8] sm:$0xff]
        %v655 = vld [vmem:[#allocation6 + $0x300] sm:$0xff]
        %v656 = vld [vmem:[#allocation6 + $0x308] sm:$0xff]
        %v657 = vld [vmem:[#allocation6 + $0x310] sm:$0xff]
        %v658 = vld [vmem:[#allocation6 + $0x318] sm:$0xff]
        %v659 = vld [vmem:[#allocation6 + $0x320] sm:$0xff]
        %v660 = vld [vmem:[#allocation6 + $0x328] sm:$0xff]
        %v661 = vld [vmem:[#allocation6 + $0x330] sm:$0xff]
        %v662 = vld [vmem:[#allocation6 + $0x338] sm:$0xff]
        %v663 = vld [vmem:[#allocation6 + $0x340] sm:$0xff]
        %v664 = vld [vmem:[#allocation6 + $0x348] sm:$0xff]
        %v665 = vld [vmem:[#allocation6 + $0x350] sm:$0xff]
        %v666 = vld [vmem:[#allocation6 + $0x358] sm:$0xff]
        %v667 = vld [vmem:[#allocation6 + $0x360] sm:$0xff]
        %v668 = vld [vmem:[#allocation6 + $0x368] sm:$0xff]
        %v669 = vld [vmem:[#allocation6 + $0x370] sm:$0xff]
        %v670 = vld [vmem:[#allocation6 + $0x378] sm:$0xff]
        %v671 = vld [vmem:[#allocation6 + $0x380] sm:$0xff]
        %v672 = vld [vmem:[#allocation6 + $0x388] sm:$0xff]
        %v673 = vld [vmem:[#allocation6 + $0x390] sm:$0xff]
        %v674 = vld [vmem:[#allocation6 + $0x398] sm:$0xff]
        %v675 = vld [vmem:[#allocation6 + $0x3a0] sm:$0xff]
        %v676 = vld [vmem:[#allocation6 + $0x3a8] sm:$0xff]
        %v677 = vld [vmem:[#allocation6 + $0x3b0] sm:$0xff]
        %v678 = vld [vmem:[#allocation6 + $0x3b8] sm:$0xff]
        %v679 = vld [vmem:[#allocation6 + $0x3c0] sm:$0xff]
        %v680 = vld [vmem:[#allocation6 + $0x3c8] sm:$0xff]
        %v681 = vld [vmem:[#allocation6 + $0x3d0] sm:$0xff]
        %v682 = vld [vmem:[#allocation6 + $0x3d8] sm:$0xff]
        %v683 = vld [vmem:[#allocation6 + $0x3e0] sm:$0xff]
        %v684 = vld [vmem:[#allocation6 + $0x3e8] sm:$0xff]
        %v685 = vld [vmem:[#allocation6 + $0x3f0] sm:$0xff]
        %v686 = vld [vmem:[#allocation6 + $0x3f8] sm:$0xff]
        %687 = vmatprep.subr.mxu0 %v560
        %688 = vmatpush1.msra.mxu0 %v559
        %689 = vmatprep.subr.mxu0 %v564
        %690 = vmatpush1.msra.mxu0 %v563
        %691 = vmatprep.subr.mxu0 %v568
        %692 = vmatpush1.msra.mxu0 %v567
        %693 = vmatprep.subr.mxu0 %v572
        %694 = vmatpush1.msra.mxu0 %v571
        %695 = vmatprep.subr.mxu0 %v576
        %696 = vmatpush1.msra.mxu0 %v575
        %697 = vmatprep.subr.mxu0 %v580
        %698 = vmatpush1.msra.mxu0 %v579
        %699 = vmatprep.subr.mxu0 %v584
        %700 = vmatpush1.msra.mxu0 %v583
        %701 = vmatprep.subr.mxu0 %v588
        %702 = vmatpush1.msra.mxu0 %v587
        %703 = vmatprep.subr.mxu0 %v592
        %704 = vmatpush1.msra.mxu0 %v591
        %705 = vmatprep.subr.mxu0 %v596
        %706 = vmatpush1.msra.mxu0 %v595
        %707 = vmatprep.subr.mxu0 %v600
        %708 = vmatpush1.msra.mxu0 %v599
        %709 = vmatprep.subr.mxu0 %v604
        %710 = vmatpush1.msra.mxu0 %v603
        %711 = vmatprep.subr.mxu0 %v608
        %712 = vmatpush1.msra.mxu0 %v607
        %713 = vmatprep.subr.mxu0 %v612
        %714 = vmatpush1.msra.mxu0 %v611
        %715 = vmatprep.subr.mxu0 %v616
        %716 = vmatpush1.msra.mxu0 %v615
        %717 = vmatprep.subr.mxu0 %v620
        %718 = vmatpush1.msra.mxu0 %v619
        %719 = vmatprep.subr.mxu0 %v624
        %720 = vmatpush1.msra.mxu0 %v623
        %721 = vmatprep.subr.mxu0 %v628
        %722 = vmatpush1.msra.mxu0 %v627
        %723 = vmatprep.subr.mxu0 %v632
        %724 = vmatpush1.msra.mxu0 %v631
        %725 = vmatprep.subr.mxu0 %v636
        %726 = vmatpush1.msra.mxu0 %v635
        %727 = vmatprep.subr.mxu0 %v640
        %728 = vmatpush1.msra.mxu0 %v639
        %729 = vmatprep.subr.mxu0 %v644
        %730 = vmatpush1.msra.mxu0 %v643
        %731 = vmatprep.subr.mxu0 %v648
        %732 = vmatpush1.msra.mxu0 %v647
        %733 = vmatprep.subr.mxu0 %v652
        %734 = vmatpush1.msra.mxu0 %v651
        %735 = vmatprep.subr.mxu0 %v656
        %736 = vmatpush1.msra.mxu0 %v655
        %737 = vmatprep.subr.mxu0 %v660
        %738 = vmatpush1.msra.mxu0 %v659
        %739 = vmatprep.subr.mxu0 %v664
        %740 = vmatpush1.msra.mxu0 %v663
        %741 = vmatprep.subr.mxu0 %v668
        %742 = vmatpush1.msra.mxu0 %v667
        %743 = vmatprep.subr.mxu0 %v672
        %744 = vmatpush1.msra.mxu0 %v671
        %745 = vmatprep.subr.mxu0 %v676
        %746 = vmatpush1.msra.mxu0 %v675
        %747 = vmatprep.subr.mxu0 %v680
        %748 = vmatpush1.msra.mxu0 %v679
        %749 = vmatprep.subr.mxu0 %v684
        %750 = vmatpush1.msra.mxu0 %v683
        %751 = vmatprep.mubr.f32.mxu0 %v557
        %752 = vmatmul.mubr.f32.gmra.mrb[0].mxu0 %v552
        %v753 = vpop.f32.mrb[0].mxu0
        %v754 = vadd.f32 0.0, %v753
        %v755 = vpop.f32.mrb[0].mxu0
        %v756 = vadd.f32 0.0, %v755
        %757 = vmatprep.mubr.f32.mxu0 %v558
        %758 = vmatmul.mubr.f32.gmra.mrb[0].mxu0 %v554
        %v759 = vpop.f32.mrb[0].mxu0
        %v760 = vadd.f32 0.0, %v759
        %v761 = vpop.f32.mrb[0].mxu0
        %v762 = vadd.f32 0.0, %v761
        %763 = vdwg.mxu0
        %764 = vmatprep.subr.mxu0 %v562
        %765 = vmatpush1.msra.mxu0 %v561
        %766 = vmatprep.subr.mxu0 %v566
        %767 = vmatpush1.msra.mxu0 %v565
        %768 = vmatprep.subr.mxu0 %v570
        %769 = vmatpush1.msra.mxu0 %v569
        %770 = vmatprep.subr.mxu0 %v574
        %771 = vmatpush1.msra.mxu0 %v573
        %772 = vmatprep.subr.mxu0 %v578
        %773 = vmatpush1.msra.mxu0 %v577
        %774 = vmatprep.subr.mxu0 %v582
        %775 = vmatpush1.msra.mxu0 %v581
        %776 = vmatprep.subr.mxu0 %v586
        %777 = vmatpush1.msra.mxu0 %v585
        %778 = vmatprep.subr.mxu0 %v590
        %779 = vmatpush1.msra.mxu0 %v589
        %780 = vmatprep.subr.mxu0 %v594
        %781 = vmatpush1.msra.mxu0 %v593
        %782 = vmatprep.subr.mxu0 %v598
        %783 = vmatpush1.msra.mxu0 %v597
        %784 = vmatprep.subr.mxu0 %v602
        %785 = vmatpush1.msra.mxu0 %v601
        %786 = vmatprep.subr.mxu0 %v606
        %787 = vmatpush1.msra.mxu0 %v605
        %788 = vmatprep.subr.mxu0 %v610
        %789 = vmatpush1.msra.mxu0 %v609
        %790 = vmatprep.subr.mxu0 %v614
        %791 = vmatpush1.msra.mxu0 %v613
        %792 = vmatprep.subr.mxu0 %v618
        %793 = vmatpush1.msra.mxu0 %v617
        %794 = vmatprep.subr.mxu0 %v622
        %795 = vmatpush1.msra.mxu0 %v621
        %796 = vmatprep.subr.mxu0 %v626
        %797 = vmatpush1.msra.mxu0 %v625
        %798 = vmatprep.subr.mxu0 %v630
        %799 = vmatpush1.msra.mxu0 %v629
        %800 = vmatprep.subr.mxu0 %v634
        %801 = vmatpush1.msra.mxu0 %v633
        %802 = vmatprep.subr.mxu0 %v638
        %803 = vmatpush1.msra.mxu0 %v637
        %804 = vmatprep.subr.mxu0 %v642
        %805 = vmatpush1.msra.mxu0 %v641
        %806 = vmatprep.subr.mxu0 %v646
        %807 = vmatpush1.msra.mxu0 %v645
        %808 = vmatprep.subr.mxu0 %v650
        %809 = vmatpush1.msra.mxu0 %v649
        %810 = vmatprep.subr.mxu0 %v654
        %811 = vmatpush1.msra.mxu0 %v653
        %812 = vmatprep.subr.mxu0 %v658
        %813 = vmatpush1.msra.mxu0 %v657
        %814 = vmatprep.subr.mxu0 %v662
        %815 = vmatpush1.msra.mxu0 %v661
        %816 = vmatprep.subr.mxu0 %v666
        %817 = vmatpush1.msra.mxu0 %v665
        %818 = vmatprep.subr.mxu0 %v670
        %819 = vmatpush1.msra.mxu0 %v669
        %820 = vmatprep.subr.mxu0 %v674
        %821 = vmatpush1.msra.mxu0 %v673
        %822 = vmatprep.subr.mxu0 %v678
        %823 = vmatpush1.msra.mxu0 %v677
        %824 = vmatprep.subr.mxu0 %v682
        %825 = vmatpush1.msra.mxu0 %v681
        %826 = vmatprep.subr.mxu0 %v686
        %827 = vmatpush1.msra.mxu0 %v685
        %828 = vmatprep.mubr.f32.mxu0 %v557
        %829 = vmatmul.mubr.f32.gmra.mrb[0].mxu0 %v552
        %v830 = vpop.f32.mrb[0].mxu0
        %v831 = vadd.f32 0.0, %v830
        %v832 = vpop.f32.mrb[0].mxu0
        %v833 = vadd.f32 0.0, %v832
        %834 = vmatprep.mubr.f32.mxu0 %v558
        %835 = vmatmul.mubr.f32.gmra.mrb[0].mxu0 %v554
        %v836 = vpop.f32.mrb[0].mxu0
        %v837 = vadd.f32 0.0, %v836
        %v838 = vpop.f32.mrb[0].mxu0
        %v839 = vadd.f32 0.0, %v838
        %840 = vdwg.mxu0
        %841 = vst [vmem:[%s221] sm:$0xff] %v754
        %842 = vst [vmem:[%s221 + $0x8] sm:$0xff] %v756
        %843 = vst [vmem:[%s221 + $0x10] sm:$0xff] %v831
        %844 = vst [vmem:[%s221 + $0x18] sm:$0xff] %v833
        %845 = vst [vmem:[%s221 + $0x20] sm:$0xff] %v760
        %846 = vst [vmem:[%s221 + $0x28] sm:$0xff] %v762
        %847 = vst [vmem:[%s221 + $0x30] sm:$0xff] %v837
        %848 = vst [vmem:[%s221 + $0x38] sm:$0xff] %v839
        %s849 = smul.u32 2, %s18
        %p850 = scmp.lt.s32.totalorder %s849, 7
        %s851 = scalar_select %p850, %s849, 7
        %s852 = smul.addr %s851, 4
        %s853 = smul.addr %s852, 8
        %s854 = scalar_lea.vmem %s3, %s853
        // Predicated region
        $region45: #{forward.1} parent=31 // pred_check
          %p855 = pneg %p104
        $region46: #{forward.1} parent=31 // pred_check_branch
          %857 = sbr.rel (%p855) target = $region48
        $region47: #{forward.1} parent=31 // pred_region
          %s858 = smul.u32 2, %s18
        $region48: #{forward.1} parent=31 // pred_fallthru
          _
      $region32: #{forward.1} parent=5 // pred_fallthru
        _
      %p859 = scmp.le.s32.totalorder 2, %s13
      // Predicated region
      $region49: #{forward.1} parent=5 // pred_check
        %p860 = pneg %p859
      $region50: #{forward.1} parent=5 // pred_check_branch
        %862 = sbr.rel (%p860) target = $region52
      $region51: #{forward.1} parent=5 // pred_region
        %s863 = ssub.s32 %s13, 2
        // Predicated region
        $region53: #{forward.1} parent=51 // pred_check
          %p864 = pneg %p110
        $region54: #{forward.1} parent=51 // pred_check_branch
          %866 = sbr.rel (%p864) target = $region56
        $region55: #{forward.1} parent=51 // pred_region
          %s867 = smul.u32 2, %s19
          %p868 = scmp.lt.s32.totalorder %s867, 7
          %s869 = scalar_select %p868, %s867, 7
          %s870 = smul.addr %s869, 4
          %s871 = smul.addr %s870, 8
          %s872 = scalar_lea.vmem %s3, %s871
        $region56: #{forward.1} parent=51 // pred_fallthru
          _
      $region52: #{forward.1} parent=5 // pred_fallthru
        _
    $region6: #{forward.1} parent=1 // loop_footer
      %s17 = sadd.s32 1, %s13
    $region7: #{forward.1} parent=1 // loop_footer_branch
      %12 = sbr.rel target = $region3
    $region8: #{forward.1} parent=1 // loop_exit
      _
    %873 = vsyncpa [#allocation3], 1
    %s874 = scalar_lea.sflag [#allocation3], 1
    %875 = vsyncpa %s874, 1
    %876 = vsyncpa [#allocation5], 1

</llo_original>
